<compile_context>
chip_gen: v5e
topology: v5e:2x2
jax: 0.10.0
libtpu: 0.0.40
codegen_flags: <defaults>
</compile_context>

<pallas_src>
import functools

import jax
import jax.numpy as jnp
from jax import lax
from jax.experimental import pallas as pl
from jax.experimental.pallas import tpu as pltpu

HIDDEN_DIM = 16


def _mlp_kernel(x_ref, w_ref, bw_ref, o_ref, *, F, H):
    """One batch tile of the 4-layer MLP.

    x_ref  : [tb, F]    raw batch-major tile (no wrapper transpose / pad)
    w_ref  : [3, H, Fw] stacked transposed weights (w1^T, w2^T, w3^T), 0-padded
    bw_ref : [H, 8]     cols: b1, b2, b3, w4-column, (b4 scalar at [0, 4])
    o_ref  : [1, tb]    lane-dense sigmoid output
    """
    x = x_ref[...]            # [tb, F]
    w = w_ref[...]            # [3, H, Fw]
    bw = bw_ref[...]          # [H, 8]

    # fc1 + relu : contract both operands on F (w1^T @ x^T), result [H, tb].
    # The operand transpose rides the MXU/XLU path, not an extra HBM pass.
    h = lax.dot_general(
        w[0, :, :F], x,
        dimension_numbers=(((1,), (1,)), ((), ())),
        preferred_element_type=jnp.float32)                     # [H, tb]
    h = jnp.maximum(h + bw[:, 0:1], 0.0)

    # fc2 + relu : [H, H] @ [H, tb]
    h = jnp.dot(w[1, :, :H], h, preferred_element_type=jnp.float32)
    h = jnp.maximum(h + bw[:, 1:2], 0.0)

    # fc3 + relu
    h = jnp.dot(w[2, :, :H], h, preferred_element_type=jnp.float32)
    h = jnp.maximum(h + bw[:, 2:3], 0.0)

    # fc4 on the VPU (+ sublane reduce) + b4, then sigmoid -> (1, tb)
    logits = jnp.sum(h * bw[:, 3:4], axis=0, keepdims=True) + bw[0:1, 4:5]
    o_ref[...] = jax.nn.sigmoid(logits)


def mutation_binary_model(x, params, *, batch_tile=32768):
    """Forward pass of MutationBinaryModel.

    x: [B, F] (any float dtype; cast to float32)
    params: dict with w1[F,H], b1[1,H], w2[H,H], b2[1,H], w3[H,H], b3[1,H],
            w4[H,1], b4[1,1]
    returns: [B, 1] float32 sigmoid probabilities
    """
    x = jnp.asarray(x, jnp.float32)
    B, F = x.shape
    H = params["w1"].shape[1]

    def r128(v):
        return ((int(v) + 127) // 128) * 128

    # Lane-aligned batch tile: big (amortize per-step overhead), but keep the
    # grid >= 2 steps when the batch allows it (v7x megacore balance).
    tb = min(int(batch_tile), r128(B))
    if B > 2 * 128:
        tb = min(tb, r128(pl.cdiv(B, 2)))
    tb = max(128, (tb // 128) * 128)
    grid = (pl.cdiv(B, tb),)

    # Pack the three matmul weights (transposed) into one stacked stream.
    Fw = max(F, H)
    w = jnp.zeros((3, H, Fw), jnp.float32)
    w = w.at[0, :, :F].set(jnp.asarray(params["w1"], jnp.float32).T)
    w = w.at[1, :, :H].set(jnp.asarray(params["w2"], jnp.float32).T)
    w = w.at[2, :, :H].set(jnp.asarray(params["w3"], jnp.float32).T)

    # Pack all biases + the w4 column + the b4 scalar into one [H, 8] array.
    bw = jnp.zeros((H, 8), jnp.float32)
    bw = bw.at[:, 0].set(jnp.asarray(params["b1"], jnp.float32).reshape(-1))
    bw = bw.at[:, 1].set(jnp.asarray(params["b2"], jnp.float32).reshape(-1))
    bw = bw.at[:, 2].set(jnp.asarray(params["b3"], jnp.float32).reshape(-1))
    bw = bw.at[:, 3].set(jnp.asarray(params["w4"], jnp.float32).reshape(-1))
    bw = bw.at[0, 4].set(jnp.asarray(params["b4"], jnp.float32).reshape(-1)[0])

    kernel = functools.partial(_mlp_kernel, F=F, H=H)

    out = pl.pallas_call(
        kernel,
        out_shape=jax.ShapeDtypeStruct((1, B), jnp.float32),
        grid_spec=pltpu.PrefetchScalarGridSpec(
            num_scalar_prefetch=0,
            grid=grid,
            in_specs=[
                pl.BlockSpec((tb, F), lambda i: (i, 0)),        # x tile (ragged OK)
                pl.BlockSpec((3, H, Fw), lambda i: (0, 0, 0)),  # stacked w1^T/w2^T/w3^T
                pl.BlockSpec((H, 8), lambda i: (0, 0)),         # biases + w4 + b4
            ],
            out_specs=pl.BlockSpec((1, tb), lambda i: (0, i)),
        ),
        compiler_params=pltpu.CompilerParams(
            dimension_semantics=("parallel",),
            vmem_limit_bytes=48 * 1024 * 1024),
    )(x, w, bw)

    # (1, B) row-major == (B, 1) row-major: trivial reshape, no padded lanes.
    return out.reshape(B, 1)


def init_params(key, input_dim, hidden_dim):
    """Deterministic init mimicking nn.Linear's U(-1/sqrt(fan_in), 1/sqrt(fan_in))."""
    def linear(key, fan_in, fan_out):
        kw, kb = jax.random.split(key)
        bound = 1.0 / jnp.sqrt(fan_in)
        w = jax.random.uniform(kw, (fan_in, fan_out), jnp.float32, -bound, bound)
        b = jax.random.uniform(kb, (1, fan_out), jnp.float32, -bound, bound)
        return w, b

    k1, k2, k3, k4 = jax.random.split(key, 4)
    w1, b1 = linear(k1, input_dim, hidden_dim)
    w2, b2 = linear(k2, hidden_dim, hidden_dim)
    w3, b3 = linear(k3, hidden_dim, hidden_dim)
    w4, b4 = linear(k4, hidden_dim, 1)
    return dict(w1=w1, b1=b1, w2=w2, b2=b2, w3=w3, b3=b3, w4=w4, b4=b4)


def reference_forward(x, p):
    h = jnp.maximum(x @ p["w1"] + p["b1"], 0.0)
    h = jnp.maximum(h @ p["w2"] + p["b2"], 0.0)
    h = jnp.maximum(h @ p["w3"] + p["b3"], 0.0)
    return jax.nn.sigmoid(h @ p["w4"] + p["b4"])


if __name__ == "__main__":
    key = jax.random.PRNGKey(0)
    kx1, kx2, kp = jax.random.split(key, 3)

    input_dim = 32    # stands in for X_train.shape[1]
    hidden_dim = HIDDEN_DIM
    params = init_params(kp, input_dim, hidden_dim)

    # Small batch: single ragged tile (block larger than the array, masked store).
    x_small = jax.random.normal(kx1, (8, input_dim), dtype=jnp.float32)
    out_small = jax.block_until_ready(mutation_binary_model(x_small, params))
    ref_small = reference_forward(x_small, params)
    assert out_small.shape == (8, 1)
    assert jnp.allclose(out_small, ref_small, atol=1e-5, rtol=1e-5)

    # Larger batch, non-multiple of the tile: multi-step "parallel" grid with a
    # ragged last block (4 steps at batch_tile=256), no wrapper pad.
    x_big = jax.random.normal(kx2, (1000, input_dim), dtype=jnp.float32)
    out_big = jax.block_until_ready(
        mutation_binary_model(x_big, params, batch_tile=256))
    ref_big = reference_forward(x_big, params)
    assert out_big.shape == (1000, 1)
    assert jnp.allclose(out_big, ref_big, atol=1e-5, rtol=1e-5)

    print("KERNEL_OK")
</pallas_src>

<mosaic_0001>
module attributes {stable_mosaic.version = 11 : i64} {
  func.func @_mlp_kernel(%arg0: i32, %arg1: memref<128x32xf32, #tpu.memory_space<vmem>>, %arg2: memref<3x16x32xf32, #tpu.memory_space<vmem>>, %arg3: memref<16x8xf32, #tpu.memory_space<vmem>>, %arg4: memref<1x128xf32, #tpu.memory_space<vmem>>) attributes {dimension_semantics = [#tpu.dimension_semantics<parallel>], iteration_bounds = array<i64: 1>, scalar_prefetch = 0 : i64, scratch_operands = 0 : i64, tpu.core_type = #tpu.core_type<tc>, window_params = [{transform_indices = @transform_0, window_bounds = array<i64: 128, 32>}, {pipeline_mode = #tpu.pipeline_mode<synchronous>, transform_indices = @transform_1, window_bounds = array<i64: 3, 16, 32>}, {pipeline_mode = #tpu.pipeline_mode<synchronous>, transform_indices = @transform_2, window_bounds = array<i64: 16, 8>}, {transform_indices = @transform_3, window_bounds = array<i64: 1, 128>}]} {
    %c0 = arith.constant 0 : index
    %c0_0 = arith.constant 0 : index
    %0 = vector.load %arg1[%c0, %c0_0] : memref<128x32xf32, #tpu.memory_space<vmem>>, vector<128x32xf32>
    %c0_1 = arith.constant 0 : index
    %c0_2 = arith.constant 0 : index
    %c0_3 = arith.constant 0 : index
    %1 = vector.load %arg2[%c0_1, %c0_2, %c0_3] : memref<3x16x32xf32, #tpu.memory_space<vmem>>, vector<3x16x32xf32>
    %c0_4 = arith.constant 0 : index
    %c0_5 = arith.constant 0 : index
    %2 = vector.load %arg3[%c0_4, %c0_5] : memref<16x8xf32, #tpu.memory_space<vmem>>, vector<16x8xf32>
    %3 = vector.extract_strided_slice %1 {offsets = [0, 0, 0], sizes = [1, 16, 32], strides = [1, 1, 1]} : vector<3x16x32xf32> to vector<1x16x32xf32>
    %4 = vector.shape_cast %3 : vector<1x16x32xf32> to vector<16x32xf32>
    %cst = arith.constant dense<0.000000e+00> : vector<16x128xf32>
    %5 = tpu.matmul %4, %0, %cst {dimension_numbers = #tpu.dot_dimension_numbers<[1], [1], [0], [0], [0, 0, 1, 0], [], []>} : vector<16x32xf32>, vector<128x32xf32>, vector<16x128xf32> -> vector<16x128xf32>
    %6 = vector.extract_strided_slice %2 {offsets = [0, 0], sizes = [16, 1], strides = [1, 1]} : vector<16x8xf32> to vector<16x1xf32>
    %7 = vector.broadcast %6 : vector<16x1xf32> to vector<16x128xf32>
    %8 = arith.addf %5, %7 : vector<16x128xf32>
    %cst_6 = arith.constant 0.000000e+00 : f32
    %9 = vector.broadcast %cst_6 : f32 to vector<16x128xf32>
    %10 = arith.maximumf %8, %9 : vector<16x128xf32>
    %11 = vector.extract_strided_slice %1 {offsets = [1, 0, 0], sizes = [1, 16, 16], strides = [1, 1, 1]} : vector<3x16x32xf32> to vector<1x16x16xf32>
    %12 = vector.shape_cast %11 : vector<1x16x16xf32> to vector<16x16xf32>
    %cst_7 = arith.constant dense<0.000000e+00> : vector<16x128xf32>
    %13 = tpu.matmul %12, %10, %cst_7 {dimension_numbers = #tpu.dot_dimension_numbers<[1], [0], [0], [1], [0, 0, 1, 1], [], []>} : vector<16x16xf32>, vector<16x128xf32>, vector<16x128xf32> -> vector<16x128xf32>
    %14 = vector.extract_strided_slice %2 {offsets = [0, 1], sizes = [16, 1], strides = [1, 1]} : vector<16x8xf32> to vector<16x1xf32>
    %15 = vector.broadcast %14 : vector<16x1xf32> to vector<16x128xf32>
    %16 = arith.addf %13, %15 : vector<16x128xf32>
    %cst_8 = arith.constant 0.000000e+00 : f32
    %17 = vector.broadcast %cst_8 : f32 to vector<16x128xf32>
    %18 = arith.maximumf %16, %17 : vector<16x128xf32>
    %19 = vector.extract_strided_slice %1 {offsets = [2, 0, 0], sizes = [1, 16, 16], strides = [1, 1, 1]} : vector<3x16x32xf32> to vector<1x16x16xf32>
    %20 = vector.shape_cast %19 : vector<1x16x16xf32> to vector<16x16xf32>
    %cst_9 = arith.constant dense<0.000000e+00> : vector<16x128xf32>
    %21 = tpu.matmul %20, %18, %cst_9 {dimension_numbers = #tpu.dot_dimension_numbers<[1], [0], [0], [1], [0, 0, 1, 1], [], []>} : vector<16x16xf32>, vector<16x128xf32>, vector<16x128xf32> -> vector<16x128xf32>
    %22 = vector.extract_strided_slice %2 {offsets = [0, 2], sizes = [16, 1], strides = [1, 1]} : vector<16x8xf32> to vector<16x1xf32>
    %23 = vector.broadcast %22 : vector<16x1xf32> to vector<16x128xf32>
    %24 = arith.addf %21, %23 : vector<16x128xf32>
    %cst_10 = arith.constant 0.000000e+00 : f32
    %25 = vector.broadcast %cst_10 : f32 to vector<16x128xf32>
    %26 = arith.maximumf %24, %25 : vector<16x128xf32>
    %27 = vector.extract_strided_slice %2 {offsets = [0, 3], sizes = [16, 1], strides = [1, 1]} : vector<16x8xf32> to vector<16x1xf32>
    %28 = vector.broadcast %27 : vector<16x1xf32> to vector<16x128xf32>
    %29 = arith.mulf %26, %28 : vector<16x128xf32>
    %cst_11 = arith.constant dense<0.000000e+00> : vector<128xf32>
    %30 = vector.multi_reduction <add>, %29, %cst_11 [0] : vector<16x128xf32> to vector<128xf32>
    %31 = vector.shape_cast %30 : vector<128xf32> to vector<1x128xf32>
    %32 = vector.extract_strided_slice %2 {offsets = [0, 4], sizes = [1, 1], strides = [1, 1]} : vector<16x8xf32> to vector<1x1xf32>
    %33 = vector.broadcast %32 : vector<1x1xf32> to vector<1x128xf32>
    %34 = arith.addf %31, %33 : vector<1x128xf32>
    %35 = arith.negf %34 : vector<1x128xf32>
    %36 = math.exp %35 : vector<1x128xf32>
    %cst_12 = arith.constant 1.000000e+00 : f32
    %37 = vector.broadcast %cst_12 : f32 to vector<1x128xf32>
    %38 = arith.addf %37, %36 : vector<1x128xf32>
    %39 = arith.divf %37, %38 : vector<1x128xf32>
    %c0_13 = arith.constant 0 : index
    %c0_14 = arith.constant 0 : index
    %40 = vector.load %arg4[%c0_13, %c0_14] : memref<1x128xf32, #tpu.memory_space<vmem>>, vector<1x128xf32>
    tpu.vector_store %arg4[%c0_13, %c0_14], %39 {strides = array<i32>} : memref<1x128xf32, #tpu.memory_space<vmem>>, vector<1x128xf32>,
    return
  }
  func.func @transform_0(%arg0: i32) -> (i32, i32) {
    %c0_i32 = arith.constant 0 : i32
    %c0_i32_0 = arith.constant 0 : i32
    return %arg0, %c0_i32 : i32, i32
  }
  func.func @transform_1(%arg0: i32) -> (i32, i32, i32) {
    %c0_i32 = arith.constant 0 : i32
    %c0_i32_0 = arith.constant 0 : i32
    %c0_i32_1 = arith.constant 0 : i32
    %c0_i32_2 = arith.constant 0 : i32
    return %c0_i32, %c0_i32_0, %c0_i32_1 : i32, i32, i32
  }
  func.func @transform_2(%arg0: i32) -> (i32, i32) {
    %c0_i32 = arith.constant 0 : i32
    %c0_i32_0 = arith.constant 0 : i32
    %c0_i32_1 = arith.constant 0 : i32
    return %c0_i32, %c0_i32_0 : i32, i32
  }
  func.func @transform_3(%arg0: i32) -> (i32, i32) {
    %c0_i32 = arith.constant 0 : i32
    %c0_i32_0 = arith.constant 0 : i32
    return %c0_i32, %arg0 : i32, i32
  }
}

</mosaic_0001>

<llo_original>
// kernel: tpu_custom_call.1
$region0: #{tpu_custom_call.1}
  #allocation0 [shape = 'u32[]', space=smem, size = 0x4, offset = 0x4, fixed_abs, tag = 'smem constant byte address 0x4 - core index']
  #allocation1 [shape = 'u32[72,128]{1,0:T(1,128)}', space=vmem, size = 0x9000, scoped, tag = 'internal scratch']
  %s0 = inlined_call_operand.vmem [shape: f32[8,32], index: 0, kind: input, shape index: {}]
  %s1 = inlined_call_operand.hbm [shape: f32[3,16,32], index: 1, kind: input, shape index: {}]
  %s2 = inlined_call_operand.vmem [shape: f32[16,8], index: 2, kind: input, shape index: {}]
  %s3 = inlined_call_operand.hbm [shape: f32[1,8], index: 3, kind: output, shape index: {}]
  %s4 = sld [smem:[#allocation0]]
  $region26: #{tpu_custom_call.1} parent=0
    _
  %s6 = ssub.s32 1, %s4
  %s7 = scalar_select 0, %s6, %s4
  $region1: #{tpu_custom_call.1} parent=0
    #allocation2 [shape = 'u8[24576]{0}', space=vmem, size = 0x6000, scoped, tag = 'input window, operand 1, single buffered']
    #allocation3 [shape = 's32[1]{0}', space=sflag, size = 0x4, scoped, tag = 'scoped memory for tpu_custom_call.1']
    #allocation4 [shape = 's32[1]{0}', space=sflag, size = 0x4, scoped, tag = 'scoped memory for tpu_custom_call.1']
    #allocation5 [shape = 'u8[512]{0}', space=vmem, size = 0x400, scoped, tag = 'output window, operand 0, single buffered']
    %8 = vsyncpa [#allocation3], 0
    %9 = vsyncpa [#allocation4], 0
    // Predicated region
    $region2: #{tpu_custom_call.1} parent=1 // pred_check
      _
    $region3: #{tpu_custom_call.1} parent=1 // pred_check_branch
      %11 = sbr.rel (0) target = $region5
    $region4: #{tpu_custom_call.1} parent=1 // pred_region
      _
    $region5: #{tpu_custom_call.1} parent=1 // pred_fallthru
      _
    // Predicated region
    $region6: #{tpu_custom_call.1} parent=1 // pred_check
      _
    $region7: #{tpu_custom_call.1} parent=1 // pred_check_branch
      %13 = sbr.rel (0) target = $region9
    $region8: #{tpu_custom_call.1} parent=1 // pred_region
      %15 = vsyncadd [#allocation3], 0
      %s16 = sshll.u32 %s1, 4
      %s17 = int_to_ptr.hbm [resolvable:$true] %s16
      %s18 = sshll.u32 [#allocation2], 4
      %s19 = int_to_ptr.vmem [resolvable:$true] %s18
      %24 = dma.hbm_to_vmem [thread:$0]  %s17, 768, %s19, [#allocation3], 128, 128, 8
    $region9: #{tpu_custom_call.1} parent=1 // pred_fallthru
      _
    // Predicated region
    $region10: #{tpu_custom_call.1} parent=1 // pred_check
      _
    $region11: #{tpu_custom_call.1} parent=1 // pred_check_branch
      %26 = sbr.rel (0) target = $region13
    $region12: #{tpu_custom_call.1} parent=1 // pred_region
      _
    $region13: #{tpu_custom_call.1} parent=1 // pred_fallthru
      _
    // Predicated region
    $region14: #{tpu_custom_call.1} parent=1 // pred_check
      _
    $region15: #{tpu_custom_call.1} parent=1 // pred_check_branch
      %28 = sbr.rel (0) target = $region17
    $region16: #{tpu_custom_call.1} parent=1 // pred_region
      %30 = dma.done [#allocation3], 768
    $region17: #{tpu_custom_call.1} parent=1 // pred_fallthru
      _
    %v31 = vld [vmem:[%s0] sm:$0xff]
    %v32 = vld [vmem:[%s0 + $0x8] sm:$0xff]
    %v33 = vld [vmem:[%s0 + $0x10] sm:$0xff]
    %v34 = vld [vmem:[%s0 + $0x18] sm:$0xff]
    %v35 = vld [vmem:[%s0 + $0x20] sm:$0xff]
    %v36 = vld [vmem:[%s0 + $0x28] sm:$0xff]
    %v37 = vld [vmem:[%s0 + $0x30] sm:$0xff]
    %v38 = vld [vmem:[%s0 + $0x38] sm:$0xff]
    %v39 = vld [vmem:[%s0 + $0x40] sm:$0xff]
    %v40 = vld [vmem:[%s0 + $0x48] sm:$0xff]
    %v41 = vld [vmem:[%s0 + $0x50] sm:$0xff]
    %v42 = vld [vmem:[%s0 + $0x58] sm:$0xff]
    %v43 = vld [vmem:[%s0 + $0x60] sm:$0xff]
    %v44 = vld [vmem:[%s0 + $0x68] sm:$0xff]
    %v45 = vld [vmem:[%s0 + $0x70] sm:$0xff]
    %v46 = vld [vmem:[%s0 + $0x78] sm:$0xff]
    %v47 = vld [vmem:[#allocation2] sm:$0xff]
    %v48 = vld [vmem:[#allocation2 + $0x8] sm:$0xff]
    %v49 = vld [vmem:[#allocation2 + $0x10] sm:$0xff]
    %v50 = vld [vmem:[#allocation2 + $0x18] sm:$0xff]
    %v51 = vld [vmem:[#allocation2 + $0x20] sm:$0xff]
    %v52 = vld [vmem:[#allocation2 + $0x28] sm:$0xff]
    %v53 = vld [vmem:[%s2] sm:$0xff]
    %v54 = vld [vmem:[%s2 + $0x8] sm:$0xff]
    %56 = vset.pattern.permute.xlu0 0
    %57 = vperm.xlu0 %56, %v53
    %v58 = vpop.permute.xlu0 %57
    %61 = vset.pattern.permute.xlu0 0
    %62 = vperm.xlu0 %61, %v54
    %v63 = vpop.permute.xlu0 %62
    %vm65 = vcmask 261120
    %v67 = vsel %vm65, %v47, 0
    %v70 = vsel %vm65, %v48, 0
    %v73 = vsel %vm65, %v31, 0
    %v76 = vsel %vm65, %v32, 0
    %v79 = vsel %vm65, %v33, 0
    %v82 = vsel %vm65, %v34, 0
    %v85 = vsel %vm65, %v35, 0
    %v88 = vsel %vm65, %v36, 0
    %v91 = vsel %vm65, %v37, 0
    %v94 = vsel %vm65, %v38, 0
    %v97 = vsel %vm65, %v39, 0
    %v100 = vsel %vm65, %v40, 0
    %v103 = vsel %vm65, %v41, 0
    %v106 = vsel %vm65, %v42, 0
    %v109 = vsel %vm65, %v43, 0
    %v112 = vsel %vm65, %v44, 0
    %v115 = vsel %vm65, %v45, 0
    %v118 = vsel %vm65, %v46, 0
    %120 = vmatpush.xpose.msra.mxu0 %v118
    %121 = vmatpush.xpose.msra.mxu0 %v115
    %122 = vmatpush.xpose.msra.mxu0 %v112
    %123 = vmatpush.xpose.msra.mxu0 %v109
    %124 = vmatpush.xpose.msra.mxu0 %v106
    %125 = vmatpush.xpose.msra.mxu0 %v103
    %126 = vmatpush.xpose.msra.mxu0 %v100
    %127 = vmatpush.xpose.msra.mxu0 %v97
    %128 = vmatpush.xpose.msra.mxu0 %v94
    %129 = vmatpush.xpose.msra.mxu0 %v91
    %130 = vmatpush.xpose.msra.mxu0 %v88
    %131 = vmatpush.xpose.msra.mxu0 %v85
    %132 = vmatpush.xpose.msra.mxu0 %v82
    %133 = vmatpush.xpose.msra.mxu0 %v79
    %134 = vmatpush.xpose.msra.mxu0 %v76
    %135 = vmatpush.xpose.msra.mxu0 %v73
    %136 = vmatmul.f32.gmra.mxu0 %v67
    %v137 = vpop.f32.mrf.mxu0
    %v138 = vadd.f32 %v58, %v137
    %139 = vmatmul.f32.gmra.mxu0 %v70
    %v140 = vpop.f32.mrf.mxu0
    %v141 = vadd.f32 %v63, %v140
    %142 = vdwg.mxu0
    %v143 = vmax.f32 %v138, 0.0
    %v144 = vmax.f32 %v141, 0.0
    %145 = vset.pattern.permute.xlu0 1
    %146 = vperm.xlu0 %145, %v53
    %v147 = vpop.permute.xlu0 %146
    %149 = vset.pattern.permute.xlu0 1
    %150 = vperm.xlu0 %149, %v54
    %v151 = vpop.permute.xlu0 %150
    %vm153 = vcmask 130048
    %v155 = vsel %vm153, %v49, 0
    %v158 = vsel %vm153, %v50, 0
    %160 = vmatpush.msra.mxu0 0.0
    %161 = vmatpush.msra.mxu0 0.0
    %162 = vmatpush.msra.mxu0 0.0
    %163 = vmatpush.msra.mxu0 0.0
    %164 = vmatpush.msra.mxu0 0.0
    %165 = vmatpush.msra.mxu0 0.0
    %166 = vmatpush.msra.mxu0 0.0
    %167 = vmatpush.msra.mxu0 0.0
    %168 = vmatpush.msra.mxu0 0.0
    %169 = vmatpush.msra.mxu0 0.0
    %170 = vmatpush.msra.mxu0 0.0
    %171 = vmatpush.msra.mxu0 0.0
    %172 = vmatpush.msra.mxu0 0.0
    %173 = vmatpush.msra.mxu0 0.0
    %174 = vmatpush.msra.mxu0 %v144
    %175 = vmatpush.msra.mxu0 %v143
    %176 = vmatmul.f32.gmra.mxu0 %v155
    %v177 = vpop.f32.mrf.mxu0
    %v178 = vadd.f32 %v147, %v177
    %179 = vmatmul.f32.gmra.mxu0 %v158
    %v180 = vpop.f32.mrf.mxu0
    %v181 = vadd.f32 %v151, %v180
    %182 = vdwg.mxu0
    %v183 = vmax.f32 %v178, 0.0
    %v184 = vmax.f32 %v181, 0.0
    %185 = vset.pattern.permute.xlu0 2
    %186 = vperm.xlu0 %185, %v53
    %v187 = vpop.permute.xlu0 %186
    %189 = vset.pattern.permute.xlu0 2
    %190 = vperm.xlu0 %189, %v54
    %v191 = vpop.permute.xlu0 %190
    %v194 = vsel %vm153, %v51, 0
    %v197 = vsel %vm153, %v52, 0
    %199 = vmatpush.msra.mxu0 0.0
    %200 = vmatpush.msra.mxu0 0.0
    %201 = vmatpush.msra.mxu0 0.0
    %202 = vmatpush.msra.mxu0 0.0
    %203 = vmatpush.msra.mxu0 0.0
    %204 = vmatpush.msra.mxu0 0.0
    %205 = vmatpush.msra.mxu0 0.0
    %206 = vmatpush.msra.mxu0 0.0
    %207 = vmatpush.msra.mxu0 0.0
    %208 = vmatpush.msra.mxu0 0.0
    %209 = vmatpush.msra.mxu0 0.0
    %210 = vmatpush.msra.mxu0 0.0
    %211 = vmatpush.msra.mxu0 0.0
    %212 = vmatpush.msra.mxu0 0.0
    %213 = vmatpush.msra.mxu0 %v184
    %214 = vmatpush.msra.mxu0 %v183
    %215 = vmatmul.f32.gmra.mxu0 %v194
    %v216 = vpop.f32.mrf.mxu0
    %v217 = vadd.f32 %v187, %v216
    %218 = vmatmul.f32.gmra.mxu0 %v197
    %v219 = vpop.f32.mrf.mxu0
    %v220 = vadd.f32 %v191, %v219
    %221 = vdwg.mxu0
    %v222 = vmax.f32 %v217, 0.0
    %v223 = vmax.f32 %v220, 0.0
    %224 = vset.pattern.permute.xlu0 3
    %225 = vperm.xlu0 %224, %v53
    %v226 = vpop.permute.xlu0 %225
    %228 = vset.pattern.permute.xlu0 3
    %229 = vperm.xlu0 %228, %v54
    %v230 = vpop.permute.xlu0 %229
    %v232 = vmul.f32 %v222, %v226
    %v233 = vmul.f32 %v223, %v230
    %v234 = vadd.f32 %v232, %v233
    %v235 = vrot.slane %v234, 4
    %v236 = vadd.f32 %v234, %v235
    %v237 = vrot.slane %v236, 2
    %v238 = vadd.f32 %v236, %v237
    %v239 = vrot.slane %v238, 1
    %v240 = vadd.f32 %v238, %v239
    %241 = vset.pattern.permute.xlu0 4
    %242 = vperm.xlu0 %241, %v53
    %v243 = vpop.permute.xlu0 %242
    %v245 = vadd.f32 %v240, %v243
    %v246 = vxor.u32 %v245, 2147483648
    %v247 = vmul.f32 %v246, 1.442695
    %v248 = vpow.pop %v247
    %v249 = vadd.f32 %v248, 1.0
    %v250 = vrcp.pop %v249
    %v251 = vmul.f32 %v249, %v250
    %v252 = vsub.f32 1.0, %v251
    %v253 = vmul.f32 %v250, %v252
    %v254 = vadd.f32 %v250, %v253
    %vm255 = vweird.f32 %v249
    %vm256 = vweird.f32 %v250
    %vm257 = vmor %vm255, %vm256
    %v258 = vsel %vm257, %v250, %v254
    %v259 = vand.u32 2147483647, %v249
    %vm260 = vcmp.eq.f32.partialorder %v259, 8.507059e+37
    %v261 = vand.u32 %v249, 2147483648
    %v262 = vor.u32 1.1754944e-38, %v261
    %v263 = vsel %vm260, %v262, %v258
    %v264 = vmul.f32 1.0, %v263
    %265 = vst [vmem:[#allocation5] sm:$0x1] %v264
    // Predicated region
    $region18: #{tpu_custom_call.1} parent=1 // pred_check
      _
    $region19: #{tpu_custom_call.1} parent=1 // pred_check_branch
      %267 = sbr.rel (0) target = $region21
    $region20: #{tpu_custom_call.1} parent=1 // pred_region
      %269 = vsyncadd [#allocation4], 0
      %s271 = sshll.u32 [#allocation5], 4
      %s272 = int_to_ptr.vmem [resolvable:$true] %s271
      %s273 = sshll.u32 %s3, 4
      %s274 = int_to_ptr.hbm [resolvable:$true] %s273
      %276 = dma.vmem_to_hbm [thread:$0]  %s272, 16, %s274, [#allocation4]
    $region21: #{tpu_custom_call.1} parent=1 // pred_fallthru
      _
    // Predicated region
    $region22: #{tpu_custom_call.1} parent=1 // pred_check
      _
    $region23: #{tpu_custom_call.1} parent=1 // pred_check_branch
      %278 = sbr.rel (0) target = $region25
    $region24: #{tpu_custom_call.1} parent=1 // pred_region
      %280 = dma.done [#allocation4], 16
    $region25: #{tpu_custom_call.1} parent=1 // pred_fallthru
      _
    %281 = vsyncpa [#allocation3], 1
    %282 = vsyncpa [#allocation4], 1

</llo_original>
